<compile_context>
chip_gen: v5e
topology: v5e:2x2
jax: 0.10.0
libtpu: 0.0.40
codegen_flags: <defaults>
</compile_context>

<pallas_src>
import jax
import jax.numpy as jnp
from jax.experimental import pallas as pl
from jax.experimental.pallas import tpu as pltpu


def _multibox_loss_kernel(c_ref, r_ref, t_ref, out_ref):
    bt = c_ref.shape[0]                                  # samples handled by this grid step

    c = c_ref[...].astype(jnp.float32)                   # [bt, N, 2] class logits
    r = r_ref[...].astype(jnp.float32)                   # [bt, N, 4] regression preds
    t = t_ref[...].astype(jnp.float32)                   # [bt, N, 5] (label, reg targets)

    labels = t[:, :, 0:1]                                # [bt, N, 1]
    tgt_reg = t[:, :, 1:5]                               # [bt, N, 4]
    l0 = c[:, :, 0:1]                                    # [bt, N, 1]
    l1 = c[:, :, 1:2]                                    # [bt, N, 1]

    is_pos = labels == 1.0                               # exact for integer-valued -1/0/1 labels
    pos = is_pos.astype(jnp.float32)
    valid = pos + (labels == 0.0).astype(jnp.float32)    # rows kept by pos_index + neg_index

    # ---- classification: stable 2-class CE == softplus(l_other - l_picked) ----
    # Ignore rows take the c==0 branch; they are zeroed by `valid` below.
    z = jnp.where(is_pos, l1 - l0, l0 - l1)              # [bt, N, 1]
    ce = jnp.maximum(-z, 0.0) + jnp.log(1.0 + jnp.exp(-jnp.abs(z)))
    closs = jnp.sum(ce * valid, axis=1) * (1.0 / 64.0)   # [bt, 1]

    # ---- regression: smooth-L1; (sum coords / 4, sum over pos / 16) == masked sum / 64 ----
    diff = r - tgt_reg
    ad = jnp.abs(diff)
    sl1 = jnp.where(ad < 1.0, 0.5 * diff * diff, ad - 0.5)            # [bt, N, 4]
    sl1_box = jnp.sum(sl1 * pos, axis=2, keepdims=True)               # [bt, N, 1]
    rloss = jnp.sum(sl1_box, axis=1) * (1.0 / 64.0)                   # [bt, 1]

    total = closs + rloss                                             # [bt, 1]

    # One lane-dense output tile per step: sublane s = sample s, lanes 0..2 = (c, r, total).
    out_ref[...] = jnp.zeros_like(out_ref)
    out_ref[0:bt, 0:3] = jnp.concatenate([closs, rloss, total], axis=1)


def _round_up(x, m):
    return ((x + m - 1) // m) * m


@jax.jit
def multibox_loss_batched(cout, rout, targets):
    """cout [B,N,2], rout [B,N,4], targets [B,N,5] -> (closs, rloss, loss), each [B]."""
    b, n, _ = targets.shape
    num_steps = 1 if b == 1 else 2            # 2 parallel steps feed both v7x TensorCores
    bt = -(-b // num_steps)                   # samples per grid step
    b_pad = num_steps * bt
    if b_pad != b:                            # only for odd B > 1; padded samples are discarded
        pad = ((0, b_pad - b), (0, 0), (0, 0))
        cout = jnp.pad(cout, pad)
        rout = jnp.pad(rout, pad)
        targets = jnp.pad(targets, pad)
    rows = max(8, _round_up(bt, 8))

    out = pl.pallas_call(
        _multibox_loss_kernel,
        out_shape=jax.ShapeDtypeStruct((num_steps, rows, 128), jnp.float32),
        grid=(num_steps,),
        in_specs=[
            pl.BlockSpec((bt, n, 2), lambda i: (i, 0, 0)),
            pl.BlockSpec((bt, n, 4), lambda i: (i, 0, 0)),
            pl.BlockSpec((bt, n, 5), lambda i: (i, 0, 0)),
        ],
        out_specs=pl.BlockSpec((None, rows, 128), lambda i: (i, 0, 0)),
        compiler_params=pltpu.CompilerParams(
            dimension_semantics=("parallel",),    # megacore sharding on v7x; no-op on v5e/v6e
        ),
        cost_estimate=pl.CostEstimate(
            flops=b_pad * n * 40,
            transcendentals=b_pad * n * 2,
            bytes_accessed=(b_pad * n * 11 + num_steps * rows * 128) * 4,
        ),
    )(cout, rout, targets)

    res = out[:, :bt, :3].reshape(b_pad, 3)[:b]   # [B, 3]
    return res[:, 0], res[:, 1], res[:, 2]


def multibox_loss(cout, rout, targets):
    """Single-sample API matching MultiBoxLoss.forward((cout, rout), targets)."""
    closs, rloss, loss = multibox_loss_batched(cout[None], rout[None], targets[None])
    return closs[0], rloss[0], loss[0]


def _reference(cout, rout, targets):
    """Plain-JAX reference mirroring the PyTorch forward."""
    labels = targets[:, 0]
    pos = labels == 1.0
    neg = labels == 0.0
    logp = jax.nn.log_softmax(cout.astype(jnp.float32), axis=-1)
    idx = jnp.clip(labels, 0, 1).astype(jnp.int32)[:, None]
    ce = -jnp.take_along_axis(logp, idx, axis=-1)[:, 0]
    closs = jnp.sum(jnp.where(pos | neg, ce, 0.0)) / 64.0
    diff = rout.astype(jnp.float32) - targets[:, 1:].astype(jnp.float32)
    ad = jnp.abs(diff)
    sl1 = jnp.where(ad < 1.0, 0.5 * diff * diff, ad - 0.5)
    per_box = jnp.sum(sl1, axis=1) / 4.0
    rloss = jnp.sum(jnp.where(pos, per_box, 0.0)) / 16.0
    return closs, rloss, closs + rloss


if __name__ == "__main__":
    key = jax.random.PRNGKey(0)
    k1, k2, k3, k4 = jax.random.split(key, 4)

    B, N, C = 4, 64, 2  # 4 samples, 64 anchor boxes, 2 classes (background / foreground)
    cout = jax.random.normal(k1, (B, N, C), dtype=jnp.float32)          # class logits
    rout = jax.random.normal(k2, (B, N, 4), dtype=jnp.float32)          # box regression preds
    labels = jax.random.randint(k3, (B, N), -1, 2).astype(jnp.float32)  # -1 ignore / 0 neg / 1 pos
    reg_tgt = jax.random.normal(k4, (B, N, 4), dtype=jnp.float32)
    targets = jnp.concatenate([labels[..., None], reg_tgt], axis=-1)    # [B, N, 5]

    # Single-sample path (exact semantics of MultiBoxLoss.forward), grid = (1,).
    closs, rloss, loss = multibox_loss(cout[0], rout[0], targets[0])
    jax.block_until_ready((closs, rloss, loss))
    closs_r, rloss_r, loss_r = _reference(cout[0], rout[0], targets[0])
    assert jnp.allclose(closs, closs_r, atol=1e-5, rtol=1e-5), (closs, closs_r)
    assert jnp.allclose(rloss, rloss_r, atol=1e-5, rtol=1e-5), (rloss, rloss_r)
    assert jnp.allclose(loss, loss_r, atol=1e-5, rtol=1e-5), (loss, loss_r)

    # Batched path: whole batch in 2 parallel grid steps (both v7x TCs busy).
    cb, rb, lb = multibox_loss_batched(cout, rout, targets)
    jax.block_until_ready((cb, rb, lb))
    cr, rr, lr = jax.vmap(_reference)(cout, rout, targets)
    assert jnp.allclose(cb, cr, atol=1e-5, rtol=1e-5), (cb, cr)
    assert jnp.allclose(rb, rr, atol=1e-5, rtol=1e-5), (rb, rr)
    assert jnp.allclose(lb, lr, atol=1e-5, rtol=1e-5), (lb, lr)

    print("KERNEL_OK")
</pallas_src>

<mosaic_0001>
module attributes {stable_mosaic.version = 11 : i64} {
  func.func @_multibox_loss_kernel(%arg0: i32, %arg1: memref<1x64x2xf32, #tpu.memory_space<vmem>>, %arg2: memref<1x64x4xf32, #tpu.memory_space<vmem>>, %arg3: memref<1x64x5xf32, #tpu.memory_space<vmem>>, %arg4: memref<1x8x128xf32, #tpu.memory_space<vmem>>) attributes {dimension_semantics = [#tpu.dimension_semantics<parallel>], iteration_bounds = array<i64: 1>, scalar_prefetch = 0 : i64, scratch_operands = 0 : i64, tpu.core_type = #tpu.core_type<tc>, window_params = [{transform_indices = @transform_0, window_bounds = array<i64: 1, 64, 2>}, {transform_indices = @transform_1, window_bounds = array<i64: 1, 64, 4>}, {transform_indices = @transform_2, window_bounds = array<i64: 1, 64, 5>}, {transform_indices = @transform_3, window_bounds = array<i64: 1, 8, 128>}]} {
    %c0 = arith.constant 0 : index
    %c0_0 = arith.constant 0 : index
    %c0_1 = arith.constant 0 : index
    %0 = vector.load %arg1[%c0, %c0_0, %c0_1] : memref<1x64x2xf32, #tpu.memory_space<vmem>>, vector<1x64x2xf32>
    %c0_2 = arith.constant 0 : index
    %c0_3 = arith.constant 0 : index
    %c0_4 = arith.constant 0 : index
    %1 = vector.load %arg2[%c0_2, %c0_3, %c0_4] : memref<1x64x4xf32, #tpu.memory_space<vmem>>, vector<1x64x4xf32>
    %c0_5 = arith.constant 0 : index
    %c0_6 = arith.constant 0 : index
    %c0_7 = arith.constant 0 : index
    %2 = vector.load %arg3[%c0_5, %c0_6, %c0_7] : memref<1x64x5xf32, #tpu.memory_space<vmem>>, vector<1x64x5xf32>
    %3 = vector.extract_strided_slice %2 {offsets = [0, 0, 0], sizes = [1, 64, 1], strides = [1, 1, 1]} : vector<1x64x5xf32> to vector<1x64x1xf32>
    %4 = vector.extract_strided_slice %2 {offsets = [0, 0, 1], sizes = [1, 64, 4], strides = [1, 1, 1]} : vector<1x64x5xf32> to vector<1x64x4xf32>
    %5 = vector.extract_strided_slice %0 {offsets = [0, 0, 0], sizes = [1, 64, 1], strides = [1, 1, 1]} : vector<1x64x2xf32> to vector<1x64x1xf32>
    %6 = vector.extract_strided_slice %0 {offsets = [0, 0, 1], sizes = [1, 64, 1], strides = [1, 1, 1]} : vector<1x64x2xf32> to vector<1x64x1xf32>
    %cst = arith.constant 1.000000e+00 : f32
    %7 = vector.broadcast %cst : f32 to vector<1x64x1xf32>
    %8 = arith.cmpf oeq, %3, %7 : vector<1x64x1xf32>
    %9 = arith.extui %8 : vector<1x64x1xi1> to vector<1x64x1xi32>
    %10 = arith.sitofp %9 : vector<1x64x1xi32> to vector<1x64x1xf32>
    %cst_8 = arith.constant 0.000000e+00 : f32
    %11 = vector.broadcast %cst_8 : f32 to vector<1x64x1xf32>
    %12 = arith.cmpf oeq, %3, %11 : vector<1x64x1xf32>
    %13 = arith.extui %12 : vector<1x64x1xi1> to vector<1x64x1xi32>
    %14 = arith.sitofp %13 : vector<1x64x1xi32> to vector<1x64x1xf32>
    %15 = arith.addf %10, %14 : vector<1x64x1xf32>
    %16 = arith.subf %6, %5 : vector<1x64x1xf32>
    %17 = arith.subf %5, %6 : vector<1x64x1xf32>
    %18 = arith.select %8, %16, %17 : vector<1x64x1xi1>, vector<1x64x1xf32>
    %cst_9 = arith.constant 0.000000e+00 : f32
    %19 = vector.broadcast %cst_9 : f32 to vector<1x64x1xf32>
    %20 = arith.subf %19, %18 : vector<1x64x1xf32>
    %cst_10 = arith.constant 0.000000e+00 : f32
    %21 = vector.broadcast %cst_10 : f32 to vector<1x64x1xf32>
    %22 = arith.maximumf %20, %21 : vector<1x64x1xf32>
    %23 = math.absf %18 : vector<1x64x1xf32>
    %cst_11 = arith.constant 0.000000e+00 : f32
    %24 = vector.broadcast %cst_11 : f32 to vector<1x64x1xf32>
    %25 = arith.subf %24, %23 : vector<1x64x1xf32>
    %26 = math.exp %25 : vector<1x64x1xf32>
    %cst_12 = arith.constant 1.000000e+00 : f32
    %27 = vector.broadcast %cst_12 : f32 to vector<1x64x1xf32>
    %28 = arith.addf %27, %26 : vector<1x64x1xf32>
    %29 = math.log %28 : vector<1x64x1xf32>
    %30 = arith.addf %22, %29 : vector<1x64x1xf32>
    %31 = arith.mulf %30, %15 : vector<1x64x1xf32>
    %cst_13 = arith.constant dense<0.000000e+00> : vector<1x1xf32>
    %32 = vector.multi_reduction <add>, %31, %cst_13 [1] : vector<1x64x1xf32> to vector<1x1xf32>
    %cst_14 = arith.constant 1.562500e-02 : f32
    %33 = vector.broadcast %cst_14 : f32 to vector<1x1xf32>
    %34 = arith.mulf %32, %33 : vector<1x1xf32>
    %35 = arith.subf %1, %4 : vector<1x64x4xf32>
    %36 = math.absf %35 : vector<1x64x4xf32>
    %cst_15 = arith.constant 1.000000e+00 : f32
    %37 = vector.broadcast %cst_15 : f32 to vector<1x64x4xf32>
    %38 = arith.cmpf olt, %36, %37 : vector<1x64x4xf32>
    %cst_16 = arith.constant 5.000000e-01 : f32
    %39 = vector.broadcast %cst_16 : f32 to vector<1x64x4xf32>
    %40 = arith.mulf %39, %35 : vector<1x64x4xf32>
    %41 = arith.mulf %40, %35 : vector<1x64x4xf32>
    %cst_17 = arith.constant 5.000000e-01 : f32
    %42 = vector.broadcast %cst_17 : f32 to vector<1x64x4xf32>
    %43 = arith.subf %36, %42 : vector<1x64x4xf32>
    %44 = arith.select %38, %41, %43 : vector<1x64x4xi1>, vector<1x64x4xf32>
    %45 = vector.broadcast %10 : vector<1x64x1xf32> to vector<1x64x4xf32>
    %46 = arith.mulf %44, %45 : vector<1x64x4xf32>
    %cst_18 = arith.constant dense<0.000000e+00> : vector<1x64xf32>
    %47 = vector.multi_reduction <add>, %46, %cst_18 [2] : vector<1x64x4xf32> to vector<1x64xf32>
    %48 = vector.shape_cast %47 : vector<1x64xf32> to vector<1x64x1xf32>
    %cst_19 = arith.constant dense<0.000000e+00> : vector<1x1xf32>
    %49 = vector.multi_reduction <add>, %48, %cst_19 [1] : vector<1x64x1xf32> to vector<1x1xf32>
    %cst_20 = arith.constant 1.562500e-02 : f32
    %50 = vector.broadcast %cst_20 : f32 to vector<1x1xf32>
    %51 = arith.mulf %49, %50 : vector<1x1xf32>
    %52 = arith.addf %34, %51 : vector<1x1xf32>
    %cst_21 = arith.constant 0.000000e+00 : f32
    %53 = vector.broadcast %cst_21 : f32 to vector<8x128xf32>
    %c0_22 = arith.constant 0 : index
    %c0_23 = arith.constant 0 : index
    %c0_24 = arith.constant 0 : index
    %54 = vector.load %arg4[%c0_22, %c0_23, %c0_24] : memref<1x8x128xf32, #tpu.memory_space<vmem>>, vector<1x8x128xf32>
    %55 = vector.shape_cast %54 : vector<1x8x128xf32> to vector<8x128xf32>
    %56 = vector.shape_cast %53 : vector<8x128xf32> to vector<1x8x128xf32>
    tpu.vector_store %arg4[%c0_22, %c0_23, %c0_24], %56 {strides = array<i32>} : memref<1x8x128xf32, #tpu.memory_space<vmem>>, vector<1x8x128xf32>,
    %57 = tpu.concatenate %34, %51, %52 in 1 : vector<1x1xf32>, vector<1x1xf32>, vector<1x1xf32> -> vector<1x3xf32>
    %c0_25 = arith.constant 0 : index
    %c0_26 = arith.constant 0 : index
    %c0_27 = arith.constant 0 : index
    %58 = vector.load %arg4[%c0_25, %c0_26, %c0_27] : memref<1x8x128xf32, #tpu.memory_space<vmem>>, vector<1x1x3xf32>
    %59 = vector.shape_cast %58 : vector<1x1x3xf32> to vector<1x3xf32>
    %60 = vector.shape_cast %57 : vector<1x3xf32> to vector<1x1x3xf32>
    tpu.vector_store %arg4[%c0_25, %c0_26, %c0_27], %60 {strides = array<i32>} : memref<1x8x128xf32, #tpu.memory_space<vmem>>, vector<1x1x3xf32>,
    return
  }
  func.func @transform_0(%arg0: i32) -> (i32, i32, i32) {
    %c0_i32 = arith.constant 0 : i32
    %c0_i32_0 = arith.constant 0 : i32
    %c0_i32_1 = arith.constant 0 : i32
    return %arg0, %c0_i32, %c0_i32_0 : i32, i32, i32
  }
  func.func @transform_1(%arg0: i32) -> (i32, i32, i32) {
    %c0_i32 = arith.constant 0 : i32
    %c0_i32_0 = arith.constant 0 : i32
    %c0_i32_1 = arith.constant 0 : i32
    return %arg0, %c0_i32, %c0_i32_0 : i32, i32, i32
  }
  func.func @transform_2(%arg0: i32) -> (i32, i32, i32) {
    %c0_i32 = arith.constant 0 : i32
    %c0_i32_0 = arith.constant 0 : i32
    %c0_i32_1 = arith.constant 0 : i32
    return %arg0, %c0_i32, %c0_i32_0 : i32, i32, i32
  }
  func.func @transform_3(%arg0: i32) -> (i32, i32, i32) {
    %c0_i32 = arith.constant 0 : i32
    %c0_i32_0 = arith.constant 0 : i32
    %c0_i32_1 = arith.constant 0 : i32
    return %arg0, %c0_i32, %c0_i32_0 : i32, i32, i32
  }
}

</mosaic_0001>

<llo_original>
// kernel: multibox_loss_batched.1
$region0: #{multibox_loss_batched.1}
  #allocation0 [shape = 'u32[]', space=smem, size = 0x4, offset = 0x4, fixed_abs, tag = 'smem constant byte address 0x4 - core index']
  #allocation1 [shape = 'u32[72,128]{1,0:T(1,128)}', space=vmem, size = 0x9000, scoped, tag = 'internal scratch']
  %s0 = inlined_call_operand.vmem [shape: f32[1,64,2], index: 0, kind: input, shape index: {}]
  %s1 = inlined_call_operand.vmem [shape: f32[1,64,4], index: 1, kind: input, shape index: {}]
  %s2 = inlined_call_operand.vmem [shape: f32[1,64,5], index: 2, kind: input, shape index: {}]
  %s3 = inlined_call_operand.vmem [shape: f32[1,8,128], index: 3, kind: output, shape index: {}]
  %s4 = sld [smem:[#allocation0]]
  $region22: #{multibox_loss_batched.1} parent=0
    _
  %s6 = ssub.s32 1, %s4
  %s7 = scalar_select 0, %s6, %s4
  // Predicated region
  $region2: #{multibox_loss_batched.1} parent=0 // pred_check
    _
  $region3: #{multibox_loss_batched.1} parent=0 // pred_check_branch
    %9 = sbr.rel (0) target = $region5
  $region4: #{multibox_loss_batched.1} parent=0 // pred_region
    _
  $region5: #{multibox_loss_batched.1} parent=0 // pred_fallthru
    _
  // Predicated region
  $region6: #{multibox_loss_batched.1} parent=0 // pred_check
    _
  $region7: #{multibox_loss_batched.1} parent=0 // pred_check_branch
    %11 = sbr.rel (0) target = $region9
  $region8: #{multibox_loss_batched.1} parent=0 // pred_region
    _
  $region9: #{multibox_loss_batched.1} parent=0 // pred_fallthru
    _
  // Predicated region
  $region10: #{multibox_loss_batched.1} parent=0 // pred_check
    _
  $region11: #{multibox_loss_batched.1} parent=0 // pred_check_branch
    %13 = sbr.rel (0) target = $region13
  $region12: #{multibox_loss_batched.1} parent=0 // pred_region
    _
  $region13: #{multibox_loss_batched.1} parent=0 // pred_fallthru
    _
  %v14 = vld [vmem:[%s0] sm:$0xff]
  %v15 = vld [vmem:[%s0 + $0x8] sm:$0xff]
  %v16 = vld [vmem:[%s0 + $0x10] sm:$0xff]
  %v17 = vld [vmem:[%s0 + $0x18] sm:$0xff]
  %v18 = vld [vmem:[%s0 + $0x20] sm:$0xff]
  %v19 = vld [vmem:[%s0 + $0x28] sm:$0xff]
  %v20 = vld [vmem:[%s0 + $0x30] sm:$0xff]
  %v21 = vld [vmem:[%s0 + $0x38] sm:$0xff]
  %v22 = vld [vmem:[%s1] sm:$0xff]
  %v23 = vld [vmem:[%s1 + $0x8] sm:$0xff]
  %v24 = vld [vmem:[%s1 + $0x10] sm:$0xff]
  %v25 = vld [vmem:[%s1 + $0x18] sm:$0xff]
  %v26 = vld [vmem:[%s1 + $0x20] sm:$0xff]
  %v27 = vld [vmem:[%s1 + $0x28] sm:$0xff]
  %v28 = vld [vmem:[%s1 + $0x30] sm:$0xff]
  %v29 = vld [vmem:[%s1 + $0x38] sm:$0xff]
  %v30 = vld [vmem:[%s2] sm:$0xff]
  %v31 = vld [vmem:[%s2 + $0x8] sm:$0xff]
  %v32 = vld [vmem:[%s2 + $0x10] sm:$0xff]
  %v33 = vld [vmem:[%s2 + $0x18] sm:$0xff]
  %v34 = vld [vmem:[%s2 + $0x20] sm:$0xff]
  %v35 = vld [vmem:[%s2 + $0x28] sm:$0xff]
  %v36 = vld [vmem:[%s2 + $0x30] sm:$0xff]
  %v37 = vld [vmem:[%s2 + $0x38] sm:$0xff]
  %vm38 = vcmp.eq.f32.partialorder %v30, 1.0
  %vm39 = vcmp.eq.f32.partialorder %v31, 1.0
  %vm40 = vcmp.eq.f32.partialorder %v32, 1.0
  %vm41 = vcmp.eq.f32.partialorder %v33, 1.0
  %vm42 = vcmp.eq.f32.partialorder %v34, 1.0
  %vm43 = vcmp.eq.f32.partialorder %v35, 1.0
  %vm44 = vcmp.eq.f32.partialorder %v36, 1.0
  %vm45 = vcmp.eq.f32.partialorder %v37, 1.0
  %v46 = vsel %vm38, 1, 0
  %v47 = vsel %vm39, 1, 0
  %v48 = vsel %vm40, 1, 0
  %v49 = vsel %vm41, 1, 0
  %v50 = vsel %vm42, 1, 0
  %v51 = vsel %vm43, 1, 0
  %v52 = vsel %vm44, 1, 0
  %v53 = vsel %vm45, 1, 0
  %v54 = vcvt.s32.f32 %v46
  %v55 = vcvt.s32.f32 %v47
  %v56 = vcvt.s32.f32 %v48
  %v57 = vcvt.s32.f32 %v49
  %v58 = vcvt.s32.f32 %v50
  %v59 = vcvt.s32.f32 %v51
  %v60 = vcvt.s32.f32 %v52
  %v61 = vcvt.s32.f32 %v53
  %vm62 = vcmp.eq.f32.partialorder %v30, 0.0
  %vm63 = vcmp.eq.f32.partialorder %v31, 0.0
  %vm64 = vcmp.eq.f32.partialorder %v32, 0.0
  %vm65 = vcmp.eq.f32.partialorder %v33, 0.0
  %vm66 = vcmp.eq.f32.partialorder %v34, 0.0
  %vm67 = vcmp.eq.f32.partialorder %v35, 0.0
  %vm68 = vcmp.eq.f32.partialorder %v36, 0.0
  %vm69 = vcmp.eq.f32.partialorder %v37, 0.0
  %v70 = vsel %vm62, 1, 0
  %v71 = vsel %vm63, 1, 0
  %v72 = vsel %vm64, 1, 0
  %v73 = vsel %vm65, 1, 0
  %v74 = vsel %vm66, 1, 0
  %v75 = vsel %vm67, 1, 0
  %v76 = vsel %vm68, 1, 0
  %v77 = vsel %vm69, 1, 0
  %v78 = vcvt.s32.f32 %v70
  %v79 = vcvt.s32.f32 %v71
  %v80 = vcvt.s32.f32 %v72
  %v81 = vcvt.s32.f32 %v73
  %v82 = vcvt.s32.f32 %v74
  %v83 = vcvt.s32.f32 %v75
  %v84 = vcvt.s32.f32 %v76
  %v85 = vcvt.s32.f32 %v77
  %v86 = vadd.f32 %v54, %v78
  %v87 = vadd.f32 %v55, %v79
  %v88 = vadd.f32 %v56, %v80
  %v89 = vadd.f32 %v57, %v81
  %v90 = vadd.f32 %v58, %v82
  %v91 = vadd.f32 %v59, %v83
  %v92 = vadd.f32 %v60, %v84
  %v93 = vadd.f32 %v61, %v85
  %102 = vrot.lane.b32.xlu0 %v14, 1
  %v103 = vpop.permute.xlu0 %102
  %104 = vrot.lane.b32.xlu0 %v15, 1
  %v105 = vpop.permute.xlu0 %104
  %106 = vrot.lane.b32.xlu0 %v16, 1
  %v107 = vpop.permute.xlu0 %106
  %108 = vrot.lane.b32.xlu0 %v17, 1
  %v109 = vpop.permute.xlu0 %108
  %110 = vrot.lane.b32.xlu0 %v18, 1
  %v111 = vpop.permute.xlu0 %110
  %112 = vrot.lane.b32.xlu0 %v19, 1
  %v113 = vpop.permute.xlu0 %112
  %114 = vrot.lane.b32.xlu0 %v20, 1
  %v115 = vpop.permute.xlu0 %114
  %116 = vrot.lane.b32.xlu0 %v21, 1
  %v117 = vpop.permute.xlu0 %116
  %v126 = vsub.f32 %v14, %v103
  %v127 = vsub.f32 %v15, %v105
  %v128 = vsub.f32 %v16, %v107
  %v129 = vsub.f32 %v17, %v109
  %v130 = vsub.f32 %v18, %v111
  %v131 = vsub.f32 %v19, %v113
  %v132 = vsub.f32 %v20, %v115
  %v133 = vsub.f32 %v21, %v117
  %134 = vrot.lane.b32.xlu0 %v14, 127
  %v135 = vpop.permute.xlu0 %134
  %136 = vrot.lane.b32.xlu0 %v15, 127
  %v137 = vpop.permute.xlu0 %136
  %138 = vrot.lane.b32.xlu0 %v16, 127
  %v139 = vpop.permute.xlu0 %138
  %140 = vrot.lane.b32.xlu0 %v17, 127
  %v141 = vpop.permute.xlu0 %140
  %142 = vrot.lane.b32.xlu0 %v18, 127
  %v143 = vpop.permute.xlu0 %142
  %144 = vrot.lane.b32.xlu0 %v19, 127
  %v145 = vpop.permute.xlu0 %144
  %146 = vrot.lane.b32.xlu0 %v20, 127
  %v147 = vpop.permute.xlu0 %146
  %148 = vrot.lane.b32.xlu0 %v21, 127
  %v149 = vpop.permute.xlu0 %148
  %v158 = vsub.f32 %v14, %v135
  %v159 = vsub.f32 %v15, %v137
  %v160 = vsub.f32 %v16, %v139
  %v161 = vsub.f32 %v17, %v141
  %v162 = vsub.f32 %v18, %v143
  %v163 = vsub.f32 %v19, %v145
  %v164 = vsub.f32 %v20, %v147
  %v165 = vsub.f32 %v21, %v149
  %174 = vrot.lane.b32.xlu0 %v126, 127
  %v175 = vpop.permute.xlu0 %174
  %176 = vrot.lane.b32.xlu0 %v127, 127
  %v177 = vpop.permute.xlu0 %176
  %178 = vrot.lane.b32.xlu0 %v128, 127
  %v179 = vpop.permute.xlu0 %178
  %180 = vrot.lane.b32.xlu0 %v129, 127
  %v181 = vpop.permute.xlu0 %180
  %182 = vrot.lane.b32.xlu0 %v130, 127
  %v183 = vpop.permute.xlu0 %182
  %184 = vrot.lane.b32.xlu0 %v131, 127
  %v185 = vpop.permute.xlu0 %184
  %186 = vrot.lane.b32.xlu0 %v132, 127
  %v187 = vpop.permute.xlu0 %186
  %188 = vrot.lane.b32.xlu0 %v133, 127
  %v189 = vpop.permute.xlu0 %188
  %v198 = vsel %vm38, %v175, %v158
  %v199 = vsel %vm39, %v177, %v159
  %v200 = vsel %vm40, %v179, %v160
  %v201 = vsel %vm41, %v181, %v161
  %v202 = vsel %vm42, %v183, %v162
  %v203 = vsel %vm43, %v185, %v163
  %v204 = vsel %vm44, %v187, %v164
  %v205 = vsel %vm45, %v189, %v165
  %v206 = vsub.f32 0.0, %v198
  %v207 = vsub.f32 0.0, %v199
  %v208 = vsub.f32 0.0, %v200
  %v209 = vsub.f32 0.0, %v201
  %v210 = vsub.f32 0.0, %v202
  %v211 = vsub.f32 0.0, %v203
  %v212 = vsub.f32 0.0, %v204
  %v213 = vsub.f32 0.0, %v205
  %v214 = vmax.f32 %v206, 0.0
  %v215 = vmax.f32 %v207, 0.0
  %v216 = vmax.f32 %v208, 0.0
  %v217 = vmax.f32 %v209, 0.0
  %v218 = vmax.f32 %v210, 0.0
  %v219 = vmax.f32 %v211, 0.0
  %v220 = vmax.f32 %v212, 0.0
  %v221 = vmax.f32 %v213, 0.0
  %v222 = vand.u32 2147483647, %v198
  %v223 = vand.u32 2147483647, %v199
  %v224 = vand.u32 2147483647, %v200
  %v225 = vand.u32 2147483647, %v201
  %v226 = vand.u32 2147483647, %v202
  %v227 = vand.u32 2147483647, %v203
  %v228 = vand.u32 2147483647, %v204
  %v229 = vand.u32 2147483647, %v205
  %v230 = vsub.f32 0.0, %v222
  %v231 = vsub.f32 0.0, %v223
  %v232 = vsub.f32 0.0, %v224
  %v233 = vsub.f32 0.0, %v225
  %v234 = vsub.f32 0.0, %v226
  %v235 = vsub.f32 0.0, %v227
  %v236 = vsub.f32 0.0, %v228
  %v237 = vsub.f32 0.0, %v229
  %v238 = vmul.f32 %v230, 1.442695
  %v239 = vpow.pop %v238
  %v240 = vmul.f32 %v231, 1.442695
  %v241 = vpow.pop %v240
  %v242 = vmul.f32 %v232, 1.442695
  %v243 = vpow.pop %v242
  %v244 = vmul.f32 %v233, 1.442695
  %v245 = vpow.pop %v244
  %v246 = vmul.f32 %v234, 1.442695
  %v247 = vpow.pop %v246
  %v248 = vmul.f32 %v235, 1.442695
  %v249 = vpow.pop %v248
  %v250 = vmul.f32 %v236, 1.442695
  %v251 = vpow.pop %v250
  %v252 = vmul.f32 %v237, 1.442695
  %v253 = vpow.pop %v252
  %v254 = vadd.f32 %v239, 1.0
  %v255 = vadd.f32 %v241, 1.0
  %v256 = vadd.f32 %v243, 1.0
  %v257 = vadd.f32 %v245, 1.0
  %v258 = vadd.f32 %v247, 1.0
  %v259 = vadd.f32 %v249, 1.0
  %v260 = vadd.f32 %v251, 1.0
  %v261 = vadd.f32 %v253, 1.0
  %v262 = vlog2.pop %v254
  %v263 = vmul.f32 %v262, 0.6931472
  %v264 = vlog2.pop %v255
  %v265 = vmul.f32 %v264, 0.6931472
  %v266 = vlog2.pop %v256
  %v267 = vmul.f32 %v266, 0.6931472
  %v268 = vlog2.pop %v257
  %v269 = vmul.f32 %v268, 0.6931472
  %v270 = vlog2.pop %v258
  %v271 = vmul.f32 %v270, 0.6931472
  %v272 = vlog2.pop %v259
  %v273 = vmul.f32 %v272, 0.6931472
  %v274 = vlog2.pop %v260
  %v275 = vmul.f32 %v274, 0.6931472
  %v276 = vlog2.pop %v261
  %v277 = vmul.f32 %v276, 0.6931472
  %v278 = vadd.f32 %v214, %v263
  %v279 = vadd.f32 %v215, %v265
  %v280 = vadd.f32 %v216, %v267
  %v281 = vadd.f32 %v217, %v269
  %v282 = vadd.f32 %v218, %v271
  %v283 = vadd.f32 %v219, %v273
  %v284 = vadd.f32 %v220, %v275
  %v285 = vadd.f32 %v221, %v277
  %v286 = vmul.f32 %v278, %v86
  %v287 = vmul.f32 %v279, %v87
  %v288 = vmul.f32 %v280, %v88
  %v289 = vmul.f32 %v281, %v89
  %v290 = vmul.f32 %v282, %v90
  %v291 = vmul.f32 %v283, %v91
  %v292 = vmul.f32 %v284, %v92
  %v293 = vmul.f32 %v285, %v93
  %vm294 = vcmask 7168
  %v295 = vsel %vm294, %v286, 0.0
  %v296 = vsel %vm294, %v287, 0.0
  %v297 = vadd.f32 %v295, %v296
  %v298 = vsel %vm294, %v288, 0.0
  %v299 = vadd.f32 %v297, %v298
  %v300 = vsel %vm294, %v289, 0.0
  %v301 = vadd.f32 %v299, %v300
  %v302 = vsel %vm294, %v290, 0.0
  %v303 = vadd.f32 %v301, %v302
  %v304 = vsel %vm294, %v291, 0.0
  %v305 = vadd.f32 %v303, %v304
  %v306 = vsel %vm294, %v292, 0.0
  %v307 = vadd.f32 %v305, %v306
  %v308 = vsel %vm294, %v293, 0.0
  %v309 = vadd.f32 %v307, %v308
  %v310 = vrot.slane %v309, 4
  %v311 = vadd.f32 %v309, %v310
  %v312 = vrot.slane %v311, 2
  %v313 = vadd.f32 %v311, %v312
  %v314 = vrot.slane %v313, 1
  %v315 = vadd.f32 %v313, %v314
  %v316 = vmul.f32 %v315, 0.015625
  %325 = vrot.lane.b32.xlu0 %v30, 127
  %v326 = vpop.permute.xlu0 %325
  %327 = vrot.lane.b32.xlu0 %v31, 127
  %v328 = vpop.permute.xlu0 %327
  %329 = vrot.lane.b32.xlu0 %v32, 127
  %v330 = vpop.permute.xlu0 %329
  %331 = vrot.lane.b32.xlu0 %v33, 127
  %v332 = vpop.permute.xlu0 %331
  %333 = vrot.lane.b32.xlu0 %v34, 127
  %v334 = vpop.permute.xlu0 %333
  %335 = vrot.lane.b32.xlu0 %v35, 127
  %v336 = vpop.permute.xlu0 %335
  %337 = vrot.lane.b32.xlu0 %v36, 127
  %v338 = vpop.permute.xlu0 %337
  %339 = vrot.lane.b32.xlu0 %v37, 127
  %v340 = vpop.permute.xlu0 %339
  %v349 = vsub.f32 %v22, %v326
  %v350 = vsub.f32 %v23, %v328
  %v351 = vsub.f32 %v24, %v330
  %v352 = vsub.f32 %v25, %v332
  %v353 = vsub.f32 %v26, %v334
  %v354 = vsub.f32 %v27, %v336
  %v355 = vsub.f32 %v28, %v338
  %v356 = vsub.f32 %v29, %v340
  %v357 = vand.u32 2147483647, %v349
  %v358 = vand.u32 2147483647, %v350
  %v359 = vand.u32 2147483647, %v351
  %v360 = vand.u32 2147483647, %v352
  %v361 = vand.u32 2147483647, %v353
  %v362 = vand.u32 2147483647, %v354
  %v363 = vand.u32 2147483647, %v355
  %v364 = vand.u32 2147483647, %v356
  %vm365 = vcmp.lt.f32.partialorder %v357, 1.0
  %vm366 = vcmp.lt.f32.partialorder %v358, 1.0
  %vm367 = vcmp.lt.f32.partialorder %v359, 1.0
  %vm368 = vcmp.lt.f32.partialorder %v360, 1.0
  %vm369 = vcmp.lt.f32.partialorder %v361, 1.0
  %vm370 = vcmp.lt.f32.partialorder %v362, 1.0
  %vm371 = vcmp.lt.f32.partialorder %v363, 1.0
  %vm372 = vcmp.lt.f32.partialorder %v364, 1.0
  %v373 = vmul.f32 %v349, 0.5
  %v374 = vmul.f32 %v350, 0.5
  %v375 = vmul.f32 %v351, 0.5
  %v376 = vmul.f32 %v352, 0.5
  %v377 = vmul.f32 %v353, 0.5
  %v378 = vmul.f32 %v354, 0.5
  %v379 = vmul.f32 %v355, 0.5
  %v380 = vmul.f32 %v356, 0.5
  %v381 = vmul.f32 %v373, %v349
  %v382 = vmul.f32 %v374, %v350
  %v383 = vmul.f32 %v375, %v351
  %v384 = vmul.f32 %v376, %v352
  %v385 = vmul.f32 %v377, %v353
  %v386 = vmul.f32 %v378, %v354
  %v387 = vmul.f32 %v379, %v355
  %v388 = vmul.f32 %v380, %v356
  %v389 = vsub.f32 %v357, 0.5
  %v390 = vsub.f32 %v358, 0.5
  %v391 = vsub.f32 %v359, 0.5
  %v392 = vsub.f32 %v360, 0.5
  %v393 = vsub.f32 %v361, 0.5
  %v394 = vsub.f32 %v362, 0.5
  %v395 = vsub.f32 %v363, 0.5
  %v396 = vsub.f32 %v364, 0.5
  %v397 = vsel %vm365, %v381, %v389
  %v398 = vsel %vm366, %v382, %v390
  %v399 = vsel %vm367, %v383, %v391
  %v400 = vsel %vm368, %v384, %v392
  %v401 = vsel %vm369, %v385, %v393
  %v402 = vsel %vm370, %v386, %v394
  %v403 = vsel %vm371, %v387, %v395
  %v404 = vsel %vm372, %v388, %v396
  %406 = vset.pattern.permute.xlu0 0
  %407 = vperm.xlu0 %406, %v54
  %v408 = vpop.permute.xlu0 %407
  %411 = vset.pattern.permute.xlu0 0
  %412 = vperm.xlu0 %411, %v55
  %v413 = vpop.permute.xlu0 %412
  %416 = vset.pattern.permute.xlu0 0
  %417 = vperm.xlu0 %416, %v56
  %v418 = vpop.permute.xlu0 %417
  %421 = vset.pattern.permute.xlu0 0
  %422 = vperm.xlu0 %421, %v57
  %v423 = vpop.permute.xlu0 %422
  %426 = vset.pattern.permute.xlu0 0
  %427 = vperm.xlu0 %426, %v58
  %v428 = vpop.permute.xlu0 %427
  %431 = vset.pattern.permute.xlu0 0
  %432 = vperm.xlu0 %431, %v59
  %v433 = vpop.permute.xlu0 %432
  %436 = vset.pattern.permute.xlu0 0
  %437 = vperm.xlu0 %436, %v60
  %v438 = vpop.permute.xlu0 %437
  %441 = vset.pattern.permute.xlu0 0
  %442 = vperm.xlu0 %441, %v61
  %v443 = vpop.permute.xlu0 %442
  %v445 = vmul.f32 %v397, %v408
  %v446 = vmul.f32 %v398, %v413
  %v447 = vmul.f32 %v399, %v418
  %v448 = vmul.f32 %v400, %v423
  %v449 = vmul.f32 %v401, %v428
  %v450 = vmul.f32 %v402, %v433
  %v451 = vmul.f32 %v403, %v438
  %v452 = vmul.f32 %v404, %v443
  %vm453 = vcmask 31744
  %v454 = vsel %vm453, %v445, 0.0
  %455 = vadd.xlane.f32.xlu0 %v454
  %v456 = vpop.xlane.xlu0 %455
  %v457 = vsel %vm453, %v446, 0.0
  %458 = vadd.xlane.f32.xlu0 %v457
  %v459 = vpop.xlane.xlu0 %458
  %v460 = vsel %vm453, %v447, 0.0
  %461 = vadd.xlane.f32.xlu0 %v460
  %v462 = vpop.xlane.xlu0 %461
  %v463 = vsel %vm453, %v448, 0.0
  %464 = vadd.xlane.f32.xlu0 %v463
  %v465 = vpop.xlane.xlu0 %464
  %v466 = vsel %vm453, %v449, 0.0
  %467 = vadd.xlane.f32.xlu0 %v466
  %v468 = vpop.xlane.xlu0 %467
  %v469 = vsel %vm453, %v450, 0.0
  %470 = vadd.xlane.f32.xlu0 %v469
  %v471 = vpop.xlane.xlu0 %470
  %v472 = vsel %vm453, %v451, 0.0
  %473 = vadd.xlane.f32.xlu0 %v472
  %v474 = vpop.xlane.xlu0 %473
  %v475 = vsel %vm453, %v452, 0.0
  %476 = vadd.xlane.f32.xlu0 %v475
  %v477 = vpop.xlane.xlu0 %476
  %v478 = vadd.f32 %v456, %v459
  %v479 = vadd.f32 %v478, %v462
  %v480 = vadd.f32 %v479, %v465
  %v481 = vadd.f32 %v480, %v468
  %v482 = vadd.f32 %v481, %v471
  %v483 = vadd.f32 %v482, %v474
  %v484 = vadd.f32 %v483, %v477
  %v485 = vrot.slane %v484, 4
  %v486 = vadd.f32 %v484, %v485
  %v487 = vrot.slane %v486, 2
  %v488 = vadd.f32 %v486, %v487
  %v489 = vrot.slane %v488, 1
  %v490 = vadd.f32 %v488, %v489
  %v491 = vmul.f32 %v490, 0.015625
  %v492 = vadd.f32 %v316, %v491
  %493 = vst [vmem:[%s3] sm:$0xff] 0.0
  %495 = vrot.lane.b32.xlu0 %v492, 2
  %v496 = vpop.permute.xlu0 %495
  %v498 = vsel %vm294, %v316, %v491
  %vm499 = vcmask 15360
  %v500 = vsel %vm499, %v498, %v496
  %vm501 = vcmask 16384
  %502 = vst.msk [vmem:[%s3] sm:$0x1] %vm501, %v500
  // Predicated region
  $region14: #{multibox_loss_batched.1} parent=0 // pred_check
    _
  $region15: #{multibox_loss_batched.1} parent=0 // pred_check_branch
    %504 = sbr.rel (0) target = $region17
  $region16: #{multibox_loss_batched.1} parent=0 // pred_region
    _
  $region17: #{multibox_loss_batched.1} parent=0 // pred_fallthru
    _
  // Predicated region
  $region18: #{multibox_loss_batched.1} parent=0 // pred_check
    _
  $region19: #{multibox_loss_batched.1} parent=0 // pred_check_branch
    %506 = sbr.rel (0) target = $region21
  $region20: #{multibox_loss_batched.1} parent=0 // pred_region
    _
  $region21: #{multibox_loss_batched.1} parent=0 // pred_fallthru
    _

</llo_original>
